<compile_context>
chip_gen: v6e
topology: v6e:2x2x1
jax: 0.10.0
libtpu: 0.0.40
codegen_flags: <defaults>
</compile_context>

<pallas_src>
import functools
import math

import jax
import jax.numpy as jnp
from jax.experimental import pallas as pl
from jax.experimental.pallas import tpu as pltpu

_MIB = 1024 * 1024


def make_pos_enc(d_model, max_seq_len=6, dtype=jnp.float32):
    """Sinusoidal table identical to the PyTorch buffer: (1, max_seq_len, d_model)."""
    pos = jnp.arange(max_seq_len, dtype=jnp.float32)[:, None]                  # (S, 1)
    div_term = jnp.exp(
        jnp.arange(0, d_model, 2, dtype=jnp.float32) * (-math.log(10000.0) / d_model))
    ang = pos * div_term                                                        # (S, ceil(D/2))
    pe = jnp.zeros((max_seq_len, d_model), dtype=jnp.float32)
    pe = pe.at[:, 0::2].set(jnp.sin(ang))
    pe = pe.at[:, 1::2].set(jnp.cos(ang)[:, : d_model // 2])
    return pe[None].astype(dtype)                                               # (1, S, D)


def _pos_enc_kernel(x_ref, pe_ref, o_ref):
    # (tile_b, tile_l) + (1, tile_l) broadcast add — one VPU pass over the tile.
    o_ref[...] = x_ref[...] + pe_ref[...]


def _vmem_limit_bytes():
    """Explicit scoped-VMEM limit, safe on v5e/v6e (128 MiB) and v7x (64 MiB)."""
    try:
        cap = pltpu.get_tpu_info().vmem_capacity_bytes
    except Exception:
        cap = 64 * _MIB  # conservative: v7x physical per-TC VMEM
    return int(min(48 * _MIB, (cap * 3) // 4))


def _allowed_batch_tiles(B):
    # Divisors of B satisfying the (8,128) sublane rule: full extent or multiple of 8.
    return [d for d in range(1, B + 1) if B % d == 0 and (d == B or d % 8 == 0)]


@jax.jit
def positional_encoding(x, pos_enc):
    """x: (B, S, D); pos_enc: (1, max_seq_len, D) with S <= max_seq_len."""
    B, S, D = x.shape
    L = S * D
    itemsize = jnp.dtype(x.dtype).itemsize

    # Slice like self.pos_enc[:, :x.size(1), :], flatten (contiguous -> free),
    # and cast the table to x.dtype ONCE here (not per grid step in the kernel).
    pe = pos_enc[:, :S, :].reshape(1, L).astype(x.dtype)
    xf = x.reshape(B, L)

    vmem_limit = _vmem_limit_bytes()
    pe_bytes = L * itemsize
    row_bytes = L * itemsize
    # Pipeline double-buffers the x tile and the out tile (pe may also get 2
    # buffers even though its block index never changes): budget accordingly.
    tile_budget = max((vmem_limit - 2 * pe_bytes) // 4, 128 * itemsize)

    allowed = _allowed_batch_tiles(B)                 # always contains B
    fitting = [d for d in allowed if d * row_bytes <= tile_budget]

    tile_l = L
    if fitting:
        # Prefer >=2 grid steps on the parallel batch axis (v7x: 2 TensorCores),
        # otherwise take the largest tile that fits (fewest ~0.35us grid steps).
        split = [d for d in fitting if d < B]
        tile_b = max(split) if split else max(fitting)
    else:
        # Even the smallest legal batch tile exceeds the budget: tile the
        # flattened row axis too (lane-dense multiples of 128 dividing L).
        tile_b = min(allowed)
        lane_divs = [t for t in range(128, L, 128)
                     if L % t == 0 and tile_b * t * itemsize <= tile_budget]
        if lane_divs:
            tile_l = max(lane_divs)
        # else: keep tile_l = L and rely on the explicit vmem limit.

    grid = (B // tile_b, L // tile_l)

    out = pl.pallas_call(
        _pos_enc_kernel,
        out_shape=jax.ShapeDtypeStruct((B, L), x.dtype),
        grid_spec=pltpu.PrefetchScalarGridSpec(
            num_scalar_prefetch=0,
            grid=grid,
            in_specs=[
                pl.BlockSpec((tile_b, tile_l), lambda b, l: (b, l)),
                # Constant positional table: same (batch-broadcast) block per b.
                pl.BlockSpec((1, tile_l), lambda b, l: (0, l)),
            ],
            out_specs=pl.BlockSpec((tile_b, tile_l), lambda b, l: (b, l)),
        ),
        compiler_params=pltpu.CompilerParams(
            dimension_semantics=("parallel", "parallel"),
            vmem_limit_bytes=vmem_limit),
    )(xf, pe)
    return out.reshape(B, S, D)


def _reference(x, pos_enc):
    return x + pos_enc[:, : x.shape[1], :]


if __name__ == "__main__":
    key = jax.random.PRNGKey(0)

    B, S, D = 2, 4, 32          # batch, seq (< max_seq_len exercises the slice), d_model
    MAX_SEQ_LEN = 6

    x = jax.random.normal(key, (B, S, D), dtype=jnp.float32)
    pos_enc = make_pos_enc(D, MAX_SEQ_LEN)

    out = positional_encoding(x, pos_enc)
    out = jax.block_until_ready(out)

    ref = _reference(x, pos_enc)
    assert out.shape == (B, S, D)
    assert jnp.allclose(out, ref, atol=1e-6, rtol=1e-6), "mismatch vs reference"
    print("KERNEL_OK")
</pallas_src>

<mosaic_0001>
module attributes {stable_mosaic.version = 11 : i64} {
  func.func @_pos_enc_kernel(%arg0: i32, %arg1: i32, %arg2: memref<2x128xf32, #tpu.memory_space<vmem>>, %arg3: memref<1x128xf32, #tpu.memory_space<vmem>>, %arg4: memref<2x128xf32, #tpu.memory_space<vmem>>) attributes {dimension_semantics = [#tpu.dimension_semantics<parallel>, #tpu.dimension_semantics<parallel>], iteration_bounds = array<i64: 1, 1>, scalar_prefetch = 0 : i64, scratch_operands = 0 : i64, tpu.core_type = #tpu.core_type<tc>, window_params = [{transform_indices = @transform_0, window_bounds = array<i64: 2, 128>}, {transform_indices = @transform_1, window_bounds = array<i64: 1, 128>}, {transform_indices = @transform_2, window_bounds = array<i64: 2, 128>}]} {
    %c0 = arith.constant 0 : index
    %c0_0 = arith.constant 0 : index
    %0 = vector.load %arg2[%c0, %c0_0] : memref<2x128xf32, #tpu.memory_space<vmem>>, vector<2x128xf32>
    %c0_1 = arith.constant 0 : index
    %c0_2 = arith.constant 0 : index
    %1 = vector.load %arg3[%c0_1, %c0_2] : memref<1x128xf32, #tpu.memory_space<vmem>>, vector<1x128xf32>
    %2 = vector.broadcast %1 : vector<1x128xf32> to vector<2x128xf32>
    %3 = arith.addf %0, %2 : vector<2x128xf32>
    %c0_3 = arith.constant 0 : index
    %c0_4 = arith.constant 0 : index
    %4 = vector.load %arg4[%c0_3, %c0_4] : memref<2x128xf32, #tpu.memory_space<vmem>>, vector<2x128xf32>
    tpu.vector_store %arg4[%c0_3, %c0_4], %3 {strides = array<i32>} : memref<2x128xf32, #tpu.memory_space<vmem>>, vector<2x128xf32>,
    return
  }
  func.func @transform_0(%arg0: i32, %arg1: i32) -> (i32, i32) {
    %c0_i32 = arith.constant 0 : i32
    return %arg0, %arg1 : i32, i32
  }
  func.func @transform_1(%arg0: i32, %arg1: i32) -> (i32, i32) {
    %c0_i32 = arith.constant 0 : i32
    %c0_i32_0 = arith.constant 0 : i32
    return %c0_i32, %arg1 : i32, i32
  }
  func.func @transform_2(%arg0: i32, %arg1: i32) -> (i32, i32) {
    %c0_i32 = arith.constant 0 : i32
    return %arg0, %arg1 : i32, i32
  }
}

</mosaic_0001>

<llo_original>
// kernel: positional_encoding.1
$region0: #{positional_encoding.1}
  #allocation0 [shape = 'u32[]', space=smem, size = 0x4, offset = 0x4, fixed_abs, tag = 'smem constant byte address 0x4 - core index']
  #allocation1 [shape = 'u32[144,128]{1,0:T(1,128)}', space=vmem, size = 0x12000, scoped, tag = 'internal scratch']
  %s0 = inlined_call_operand.vmem [shape: f32[2,128], index: 0, kind: input, shape index: {}]
  %s1 = inlined_call_operand.vmem [shape: f32[1,128], index: 1, kind: input, shape index: {}]
  %s2 = inlined_call_operand.vmem [shape: f32[2,128], index: 2, kind: output, shape index: {}]
  %s3 = sld [smem:[#allocation0]]
  $region18: #{positional_encoding.1} parent=0
    _
  %s5 = ssub.s32 1, %s3
  %s6 = scalar_select 0, %s5, %s3
  // Predicated region
  $region2: #{positional_encoding.1} parent=0 // pred_check
    _
  $region3: #{positional_encoding.1} parent=0 // pred_check_branch
    %8 = sbr.rel (0) target = $region5
  $region4: #{positional_encoding.1} parent=0 // pred_region
    _
  $region5: #{positional_encoding.1} parent=0 // pred_fallthru
    _
  // Predicated region
  $region6: #{positional_encoding.1} parent=0 // pred_check
    _
  $region7: #{positional_encoding.1} parent=0 // pred_check_branch
    %10 = sbr.rel (0) target = $region9
  $region8: #{positional_encoding.1} parent=0 // pred_region
    _
  $region9: #{positional_encoding.1} parent=0 // pred_fallthru
    _
  %v11 = vld [vmem:[%s0] sm:$0x3]
  %v12 = vld [vmem:[%s1] sm:$0x1]
  %v14 = vlaneseq
  %v15 = vshrl.u32 %v14, 7
  %v16 = vsub.s32 0, %v15
  %v17 = vrot.slane %v12, %v16
  %v19 = vadd.f32 %v11, %v17
  %20 = vst [vmem:[%s2] sm:$0x3] %v19
  // Predicated region
  $region10: #{positional_encoding.1} parent=0 // pred_check
    _
  $region11: #{positional_encoding.1} parent=0 // pred_check_branch
    %22 = sbr.rel (0) target = $region13
  $region12: #{positional_encoding.1} parent=0 // pred_region
    _
  $region13: #{positional_encoding.1} parent=0 // pred_fallthru
    _
  // Predicated region
  $region14: #{positional_encoding.1} parent=0 // pred_check
    _
  $region15: #{positional_encoding.1} parent=0 // pred_check_branch
    %24 = sbr.rel (0) target = $region17
  $region16: #{positional_encoding.1} parent=0 // pred_region
    _
  $region17: #{positional_encoding.1} parent=0 // pred_fallthru
    _

</llo_original>
